<compile_context>
chip_gen: v6e
topology: v6e:2x2x1
jax: 0.10.0
libtpu: 0.0.40
codegen_flags: <defaults>
</compile_context>

<pallas_src>
import functools

import jax
import jax.numpy as jnp
from jax.experimental import pallas as pl
from jax.experimental.pallas import tpu as pltpu

_LANES = 128
_SUBLANES = 8


def _round_up(a, b):
    return -(-a // b) * b


def _mse_kernel(x_ref, y_ref, o_ref, *, rows, row_tile, steps, need_mask):
    b = pl.program_id(0)   # "parallel" split (megacore on v7x)
    i = pl.program_id(1)   # "arbitrary" reduction axis

    @pl.when(i == 0)
    def _():
        o_ref[...] = jnp.zeros_like(o_ref)

    d = x_ref[...].astype(jnp.float32) - y_ref[...].astype(jnp.float32)
    sq = d * d

    if need_mask:
        # Un-clamped tile index; tiles past the end (or the garbage tail of a
        # partial tile) are zeroed out before accumulation.
        t = b * steps + i
        rows_left = rows - t * row_tile            # may be <= 0 for pad tiles
        row_ids = jax.lax.broadcasted_iota(jnp.int32, sq.shape, 0)
        sq = jnp.where(row_ids < rows_left, sq, jnp.float32(0.0))

    # Fold the (row_tile, 128) tile into (8, 128) lane/sublane partials with
    # pure VPU adds (no per-step cross-lane XLU reduce, no SMEM round trip).
    o_ref[...] += jnp.sum(
        sq.reshape(row_tile // _SUBLANES, _SUBLANES, _LANES), axis=0)


def l2_loss(x, y, *, row_tile=None, n_splits=2,
            min_kernel_elems=1 << 16, force_kernel=False):
    """Pallas equivalent of nn.MSELoss()(x, y) (reduction='mean')."""
    assert x.shape == y.shape, "MSELoss here assumes matching shapes (no broadcast)"
    n = x.size
    out_dtype = jnp.promote_types(x.dtype, y.dtype)
    if not jnp.issubdtype(out_dtype, jnp.floating):
        out_dtype = jnp.float32

    # Tiny inputs: pallas_call launch + reshape overhead dwarfs ~KB of HBM
    # traffic; let XLA fuse a plain mean instead.
    if (n < min_kernel_elems) and not force_kernel:
        d = x.astype(jnp.float32) - y.astype(jnp.float32)
        return jnp.mean(d * d).astype(out_dtype)

    xf = x.reshape(-1)
    yf = y.reshape(-1)

    # The lane-major (rows, 128) view needs the flat size to be a multiple of
    # 128.  If it isn't, pad by at most 127 zeros (zero in BOTH arrays ->
    # contributes 0 to the sum).  No padding at all in the common case.
    pad = (-n) % _LANES
    if pad:
        xf = jnp.pad(xf, (0, pad))
        yf = jnp.pad(yf, (0, pad))
    rows = xf.size // _LANES
    x2d = xf.reshape(rows, _LANES)
    y2d = yf.reshape(rows, _LANES)

    # Row-tile: big (HBM-bandwidth bound), multiple of the sublane pack factor
    # of the narrowest input dtype (8 for f32, 16 for bf16, 32 for 8-bit).
    itemsize = min(jnp.dtype(x.dtype).itemsize, jnp.dtype(y.dtype).itemsize)
    sub = _SUBLANES * max(1, 4 // itemsize)
    if row_tile is None:
        row_tile = min(2048, _round_up(rows, sub))
    assert row_tile % sub == 0 and row_tile % _SUBLANES == 0

    num_tiles = -(-rows // row_tile)
    n_splits = max(1, min(n_splits, num_tiles))
    steps = -(-num_tiles // n_splits)
    # Masking needed whenever the (n_splits x steps) tile grid over-covers rows.
    need_mask = (n_splits * steps * row_tile) != rows

    def in_index(b, i):
        # Clamp padding tiles onto the last valid tile; their contribution is
        # fully masked out in the kernel.
        return (jnp.minimum(b * steps + i, num_tiles - 1), 0)

    kernel = functools.partial(
        _mse_kernel, rows=rows, row_tile=row_tile, steps=steps,
        need_mask=need_mask)

    partials = pl.pallas_call(
        kernel,
        out_shape=jax.ShapeDtypeStruct((n_splits * _SUBLANES, _LANES),
                                       jnp.float32),
        grid_spec=pltpu.PrefetchScalarGridSpec(
            num_scalar_prefetch=0,
            grid=(n_splits, steps),
            in_specs=[
                pl.BlockSpec((row_tile, _LANES), in_index),
                pl.BlockSpec((row_tile, _LANES), in_index),
            ],
            # One (8,128) partial-sum block per split; resident across the
            # inner reduction axis (accumulator pattern).
            out_specs=pl.BlockSpec((_SUBLANES, _LANES), lambda b, i: (b, 0)),
        ),
        compiler_params=pltpu.CompilerParams(
            dimension_semantics=("parallel", "arbitrary"),
        ),
    )(x2d, y2d)

    # Single cross-lane reduce + mean scale, once, outside the hot loop.
    return (jnp.sum(partials) * jnp.float32(1.0 / n)).astype(out_dtype)


if __name__ == "__main__":
    key = jax.random.PRNGKey(0)
    kx, ky = jax.random.split(key)

    # Small NCHW-like inputs, consistent with a generic elementwise loss.
    shape = (2, 4, 16, 16)
    x = jax.random.normal(kx, shape, dtype=jnp.float32)
    y = jax.random.normal(ky, shape, dtype=jnp.float32)

    # Force the kernel path even for this tiny demo shape (the default would
    # short-circuit to plain jnp for n < 64K elements).
    loss_fn = jax.jit(functools.partial(l2_loss, force_kernel=True))

    loss = jax.block_until_ready(loss_fn(x, y))
    ref = jnp.mean((x - y) ** 2)
    assert jnp.allclose(loss, ref, rtol=1e-5, atol=1e-6), (loss, ref)

    # Extra shapes exercising the multi-tile split (odd tile count -> clamped
    # padding tile) and the non-multiple-of-128 masked-tail path.
    for idx, extra_shape in enumerate([(2, 4, 256, 300), (3, 5, 17, 19)]):
        k1, k2 = jax.random.split(jax.random.PRNGKey(idx + 1))
        xe = jax.random.normal(k1, extra_shape, dtype=jnp.float32)
        ye = jax.random.normal(k2, extra_shape, dtype=jnp.float32)
        got = jax.block_until_ready(loss_fn(xe, ye))
        want = jnp.mean((xe - ye) ** 2)
        assert jnp.allclose(got, want, rtol=1e-5, atol=1e-6), (
            extra_shape, got, want)

    print("KERNEL_OK")
</pallas_src>

<mosaic_0001>
module attributes {stable_mosaic.version = 11 : i64} {
  func.func @_mse_kernel(%arg0: i32, %arg1: i32, %arg2: memref<16x128xf32, #tpu.memory_space<vmem>>, %arg3: memref<16x128xf32, #tpu.memory_space<vmem>>, %arg4: memref<8x128xf32, #tpu.memory_space<vmem>>) attributes {dimension_semantics = [#tpu.dimension_semantics<parallel>, #tpu.dimension_semantics<arbitrary>], iteration_bounds = array<i64: 1, 1>, scalar_prefetch = 0 : i64, scratch_operands = 0 : i64, tpu.core_type = #tpu.core_type<tc>, window_params = [{transform_indices = @transform_0, window_bounds = array<i64: 16, 128>}, {transform_indices = @transform_1, window_bounds = array<i64: 16, 128>}, {transform_indices = @transform_2, window_bounds = array<i64: 8, 128>}]} {
    %c0_i32 = arith.constant 0 : i32
    %0 = arith.cmpi eq, %arg1, %c0_i32 : i32
    %1 = arith.extui %0 : i1 to i32
    %c0_i32_0 = arith.constant 0 : i32
    %2 = arith.cmpi ne, %1, %c0_i32_0 : i32
    scf.if %2 {
      %cst_8 = arith.constant 0.000000e+00 : f32
      %12 = vector.broadcast %cst_8 : f32 to vector<8x128xf32>
      %c0_9 = arith.constant 0 : index
      %c0_10 = arith.constant 0 : index
      %13 = vector.load %arg4[%c0_9, %c0_10] : memref<8x128xf32, #tpu.memory_space<vmem>>, vector<8x128xf32>
      tpu.vector_store %arg4[%c0_9, %c0_10], %12 {strides = array<i32>} : memref<8x128xf32, #tpu.memory_space<vmem>>, vector<8x128xf32>,
    } else {
    }
    %c0 = arith.constant 0 : index
    %c0_1 = arith.constant 0 : index
    %3 = vector.load %arg2[%c0, %c0_1] : memref<16x128xf32, #tpu.memory_space<vmem>>, vector<16x128xf32>
    %c0_2 = arith.constant 0 : index
    %c0_3 = arith.constant 0 : index
    %4 = vector.load %arg3[%c0_2, %c0_3] : memref<16x128xf32, #tpu.memory_space<vmem>>, vector<16x128xf32>
    %5 = arith.subf %3, %4 : vector<16x128xf32>
    %6 = arith.mulf %5, %5 : vector<16x128xf32>
    %c0_4 = arith.constant 0 : index
    %c0_5 = arith.constant 0 : index
    %7 = vector.load %arg4[%c0_4, %c0_5] : memref<8x128xf32, #tpu.memory_space<vmem>>, vector<8x128xf32>
    %8 = vector.shape_cast %6 : vector<16x128xf32> to vector<2x8x128xf32>
    %cst = arith.constant dense<0.000000e+00> : vector<8x128xf32>
    %9 = vector.multi_reduction <add>, %8, %cst [0] : vector<2x8x128xf32> to vector<8x128xf32>
    %10 = arith.addf %7, %9 : vector<8x128xf32>
    %c0_6 = arith.constant 0 : index
    %c0_7 = arith.constant 0 : index
    %11 = vector.load %arg4[%c0_6, %c0_7] : memref<8x128xf32, #tpu.memory_space<vmem>>, vector<8x128xf32>
    tpu.vector_store %arg4[%c0_6, %c0_7], %10 {strides = array<i32>} : memref<8x128xf32, #tpu.memory_space<vmem>>, vector<8x128xf32>,
    return
  }
  func.func @transform_0(%arg0: i32, %arg1: i32) -> (i32, i32) {
    %c1_i32 = arith.constant 1 : i32
    %0 = arith.muli %arg0, %c1_i32 : i32
    %1 = arith.addi %0, %arg1 : i32
    %c0_i32 = arith.constant 0 : i32
    %2 = arith.minsi %1, %c0_i32 : i32
    %c0_i32_0 = arith.constant 0 : i32
    %c0_i32_1 = arith.constant 0 : i32
    return %2, %c0_i32_0 : i32, i32
  }
  func.func @transform_1(%arg0: i32, %arg1: i32) -> (i32, i32) {
    %c1_i32 = arith.constant 1 : i32
    %0 = arith.muli %arg0, %c1_i32 : i32
    %1 = arith.addi %0, %arg1 : i32
    %c0_i32 = arith.constant 0 : i32
    %2 = arith.minsi %1, %c0_i32 : i32
    %c0_i32_0 = arith.constant 0 : i32
    %c0_i32_1 = arith.constant 0 : i32
    return %2, %c0_i32_0 : i32, i32
  }
  func.func @transform_2(%arg0: i32, %arg1: i32) -> (i32, i32) {
    %c0_i32 = arith.constant 0 : i32
    %c0_i32_0 = arith.constant 0 : i32
    return %arg0, %c0_i32 : i32, i32
  }
}

</mosaic_0001>

<llo_original>
// kernel: l2_loss.1
$region0: #{l2_loss.1}
  #allocation0 [shape = 'u32[]', space=smem, size = 0x4, offset = 0x4, fixed_abs, tag = 'smem constant byte address 0x4 - core index']
  #allocation1 [shape = 'u32[144,128]{1,0:T(1,128)}', space=vmem, size = 0x12000, scoped, tag = 'internal scratch']
  %s0 = inlined_call_operand.vmem [shape: f32[16,128], index: 0, kind: input, shape index: {}]
  %s1 = inlined_call_operand.vmem [shape: f32[16,128], index: 1, kind: input, shape index: {}]
  %s2 = inlined_call_operand.vmem [shape: f32[8,128], index: 2, kind: output, shape index: {}]
  %s3 = sld [smem:[#allocation0]]
  $region22: #{l2_loss.1} parent=0
    _
  %s5 = ssub.s32 1, %s3
  %s6 = scalar_select 0, %s5, %s3
  // Predicated region
  $region2: #{l2_loss.1} parent=0 // pred_check
    _
  $region3: #{l2_loss.1} parent=0 // pred_check_branch
    %8 = sbr.rel (0) target = $region5
  $region4: #{l2_loss.1} parent=0 // pred_region
    %s9 = sadd.s32 0, 0
    %p10 = scmp.lt.s32.totalorder %s9, 0
    %s11 = scalar_select %p10, %s9, 0
    %s12 = smul.u32 2, %s11
    %p13 = scmp.lt.s32.totalorder %s12, 1
    %s14 = scalar_select %p13, %s12, 1
    %s15 = smul.addr %s14, 8
    %s16 = scalar_lea.vmem %s0, %s15
    %s17 = sadd.s32 0, 0
    %p18 = scmp.lt.s32.totalorder %s17, 0
    %s19 = scalar_select %p18, %s17, 0
    %s20 = smul.u32 2, %s19
  $region5: #{l2_loss.1} parent=0 // pred_fallthru
    _
  // Predicated region
  $region6: #{l2_loss.1} parent=0 // pred_check
    _
  $region7: #{l2_loss.1} parent=0 // pred_check_branch
    %22 = sbr.rel (0) target = $region9
  $region8: #{l2_loss.1} parent=0 // pred_region
    %s23 = sadd.s32 0, 0
    %p24 = scmp.lt.s32.totalorder %s23, 0
    %s25 = scalar_select %p24, %s23, 0
    %s26 = smul.u32 2, %s25
    %p27 = scmp.lt.s32.totalorder %s26, 1
    %s28 = scalar_select %p27, %s26, 1
    %s29 = smul.addr %s28, 8
    %s30 = scalar_lea.vmem %s1, %s29
    %s31 = sadd.s32 0, 0
    %p32 = scmp.lt.s32.totalorder %s31, 0
    %s33 = scalar_select %p32, %s31, 0
    %s34 = smul.u32 2, %s33
  $region9: #{l2_loss.1} parent=0 // pred_fallthru
    _
  %s35 = sadd.s32 0, 0
  %p36 = scmp.lt.s32.totalorder %s35, 0
  %s37 = scalar_select %p36, %s35, 0
  %s38 = smul.u32 2, %s37
  %p39 = scmp.lt.s32.totalorder %s38, 1
  %s40 = scalar_select %p39, %s38, 1
  %s41 = smul.addr %s40, 8
  %s42 = scalar_lea.vmem %s0, %s41
  %s43 = sadd.s32 0, 0
  %p44 = scmp.lt.s32.totalorder %s43, 0
  %s45 = scalar_select %p44, %s43, 0
  %s46 = smul.u32 2, %s45
  %p47 = scmp.lt.s32.totalorder %s46, 1
  %s48 = scalar_select %p47, %s46, 1
  %s49 = smul.addr %s48, 8
  %s50 = scalar_lea.vmem %s1, %s49
  %s51 = sadd.s32 0, 0
  %p52 = scmp.lt.s32.totalorder %s51, 0
  %s53 = scalar_select %p52, %s51, 0
  %s54 = smul.u32 2, %s53
  %p55 = scmp.lt.s32.totalorder %s54, 1
  %s56 = scalar_select %p55, %s54, 1
  %s57 = smul.addr %s56, 8
  %s58 = scalar_lea.vmem %s0, %s57
  %s59 = sadd.s32 0, 0
  %p60 = scmp.lt.s32.totalorder %s59, 0
  %s61 = scalar_select %p60, %s59, 0
  %s62 = smul.u32 2, %s61
  %s63 = sadd.s32 0, 0
  %p64 = scmp.lt.s32.totalorder %s63, 0
  %s65 = scalar_select %p64, %s63, 0
  %s66 = smul.u32 2, %s65
  %p67 = scmp.lt.s32.totalorder %s66, 1
  %s68 = scalar_select %p67, %s66, 1
  %s69 = smul.addr %s68, 8
  %s70 = scalar_lea.vmem %s1, %s69
  %s71 = sadd.s32 0, 0
  %p72 = scmp.lt.s32.totalorder %s71, 0
  %s73 = scalar_select %p72, %s71, 0
  %s74 = smul.u32 2, %s73
  %p75 = scmp.eq.s32.totalorder 0, 0
  // Predicated region
  $region10: #{l2_loss.1} parent=0 // pred_check
    %p76 = pneg %p75
  $region11: #{l2_loss.1} parent=0 // pred_check_branch
    %78 = sbr.rel (%p76) target = $region13
  $region12: #{l2_loss.1} parent=0 // pred_region
    %79 = vst [vmem:[%s2] sm:$0xff] 0.0
  $region13: #{l2_loss.1} parent=0 // pred_fallthru
    _
  %v80 = vld [vmem:[%s58] sm:$0xff]
  %v81 = vld [vmem:[%s58 + $0x8] sm:$0xff]
  %v82 = vld [vmem:[%s70] sm:$0xff]
  %v83 = vld [vmem:[%s70 + $0x8] sm:$0xff]
  %v84 = vsub.f32 %v80, %v82
  %v85 = vsub.f32 %v81, %v83
  %v86 = vmul.f32 %v84, %v84
  %v87 = vmul.f32 %v85, %v85
  %v88 = vld [vmem:[%s2] sm:$0xff]
  %v89 = vadd.f32 %v86, %v87
  %v90 = vadd.f32 %v88, %v89
  %91 = vst [vmem:[%s2] sm:$0xff] %v90
  // Predicated region
  $region14: #{l2_loss.1} parent=0 // pred_check
    _
  $region15: #{l2_loss.1} parent=0 // pred_check_branch
    %93 = sbr.rel (0) target = $region17
  $region16: #{l2_loss.1} parent=0 // pred_region
    _
  $region17: #{l2_loss.1} parent=0 // pred_fallthru
    _
  // Predicated region
  $region18: #{l2_loss.1} parent=0 // pred_check
    _
  $region19: #{l2_loss.1} parent=0 // pred_check_branch
    %95 = sbr.rel (0) target = $region21
  $region20: #{l2_loss.1} parent=0 // pred_region
    _
  $region21: #{l2_loss.1} parent=0 // pred_fallthru
    _

</llo_original>
